<compile_context>
chip_gen: v5e
topology: v5e:2x2
jax: 0.10.0
libtpu: 0.0.40
codegen_flags: <defaults>
</compile_context>

<pallas_src>
import functools

import jax
import jax.numpy as jnp
from jax.experimental import pallas as pl
from jax.experimental.pallas import tpu as pltpu

_LANE = 128      # lane width: hidden dims padded to multiples of this
_SUBLANE = 8     # sublane granularity for the batch (second-to-last) dim


def _round_up(x, m):
    return ((x + m - 1) // m) * m


def _mlp_kernel(x_ref, w1_ref, b1_ref, w2_ref, b2_ref, w3_ref, b3_ref, o_ref,
                *, compute_dtype):
    # X tile arrives as f32 straight from HBM; cast to bf16 in-kernel (VPU
    # filler under the MXU) instead of materializing a bf16 copy in HBM.
    x = x_ref[...].astype(compute_dtype)                     # (TILE_N, D_in)
    # linear1 + clamp(min=0); accumulate in f32 on the MXU, bias-add in f32.
    h1 = jnp.dot(x, w1_ref[...], preferred_element_type=jnp.float32) + b1_ref[...]
    h1 = jnp.maximum(h1, 0.0).astype(compute_dtype)          # (TILE_N, H1_pad)
    # linear2 + clamp(min=0)
    h2 = jnp.dot(h1, w2_ref[...], preferred_element_type=jnp.float32) + b2_ref[...]
    h2 = jnp.maximum(h2, 0.0).astype(compute_dtype)          # (TILE_N, H2_pad)
    # linear3 (no activation) -> only the real D_out columns are produced.
    y = jnp.dot(h2, w3_ref[...], preferred_element_type=jnp.float32) + b3_ref[...]
    o_ref[...] = y.astype(o_ref.dtype)                       # (TILE_N, D_out)


def prepare_params(params, compute_dtype=jnp.bfloat16):
    """One-time conversion of PyTorch-convention params.

    Transposes weights to (in, out) and casts them to bf16 ONCE.  Only the
    hidden dims (H1, H2) are zero-padded to 128 lanes; D_in (K of the first
    matmul) and D_out (N of the last matmul) keep their real sizes so the
    kernel reads/writes no dead HBM bytes for X and Y.
    """
    d_in = int(params["w1"].shape[1])
    h1 = int(params["w1"].shape[0])
    h2 = int(params["w2"].shape[0])
    d_out = int(params["w3"].shape[0])
    h1_p = _round_up(h1, _LANE)
    h2_p = _round_up(h2, _LANE)

    def prep_w(w, in_pad, out_pad):           # (out, in) -> (in_pad, out_pad) bf16
        w_t = jnp.transpose(w)
        w_t = jnp.pad(w_t, ((0, in_pad - w_t.shape[0]), (0, out_pad - w_t.shape[1])))
        return w_t.astype(compute_dtype)

    def prep_b(b, out_pad):                   # (out,) -> (1, out_pad) f32
        return jnp.pad(b, (0, out_pad - b.shape[0])).reshape(1, -1).astype(jnp.float32)

    return {
        "w1": prep_w(params["w1"], d_in, h1_p),   # (D_in,   H1_pad)  K unpadded
        "b1": prep_b(params["b1"], h1_p),
        "w2": prep_w(params["w2"], h1_p, h2_p),   # (H1_pad, H2_pad)
        "b2": prep_b(params["b2"], h2_p),
        "w3": prep_w(params["w3"], h2_p, d_out),  # (H2_pad, D_out)   N unpadded
        "b3": prep_b(params["b3"], d_out),
        "d_in": d_in, "d_out": d_out,
    }


def _choose_tiling(n, tile_n):
    """Pick (tile_n, n_pad, num_tiles): tile_n a sublane multiple, >=2 tiles
    (even count when >2) so v7x's two TensorCores both get work."""
    n_sub = _round_up(n, _SUBLANE)
    tile_n = max(_SUBLANE, min(_round_up(tile_n, _SUBLANE), n_sub))
    num_tiles = -(-n_sub // tile_n)
    if num_tiles == 1 and n_sub > _SUBLANE:
        num_tiles = 2                       # split even small batches across 2 TCs
    elif num_tiles > 2 and num_tiles % 2 == 1:
        num_tiles += 1                      # keep the 2-TC split balanced
    tile_n = _round_up(-(-n_sub // num_tiles), _SUBLANE)
    n_pad = tile_n * num_tiles
    return tile_n, n_pad, num_tiles


def two_layer_net_forward(x, prep, tile_n=512):
    """x: (N, D_in) float32. prep: output of prepare_params. Returns (N, D_out) f32."""
    n, d_in = x.shape
    assert d_in == prep["d_in"]
    d_out = prep["d_out"]
    compute_dtype = prep["w1"].dtype
    h1_p = prep["w1"].shape[1]
    h2_p = prep["w2"].shape[1]

    tile_n, n_pad, num_tiles = _choose_tiling(n, tile_n)

    # Pad ONLY the batch dim (zeros); X keeps its f32 dtype and real D_in width.
    x_in = x if n_pad == n else jnp.pad(x, ((0, n_pad - n), (0, 0)))

    grid = (num_tiles,)
    # Last block dims that aren't 128-multiples (D_in, D_out) equal the full
    # array dims, which satisfies the (8,128) BlockSpec rule.
    x_spec = pl.BlockSpec((tile_n, d_in), lambda i: (i, 0))
    out_spec = pl.BlockSpec((tile_n, d_out), lambda i: (i, 0))
    resident = lambda i: (0, 0)   # same block every step -> stays VMEM-resident
    w_specs = [
        pl.BlockSpec(prep["w1"].shape, resident),
        pl.BlockSpec(prep["b1"].shape, resident),
        pl.BlockSpec(prep["w2"].shape, resident),
        pl.BlockSpec(prep["b2"].shape, resident),
        pl.BlockSpec(prep["w3"].shape, resident),
        pl.BlockSpec(prep["b3"].shape, resident),
    ]

    # Explicit VMEM budget with headroom: resident weights (double-buffered by
    # default), streamed X/out tiles (x2 buffers each), f32 intermediates.
    def _nbytes(a):
        return int(a.size) * jnp.dtype(a.dtype).itemsize
    resident_bytes = sum(_nbytes(prep[k]) for k in ("w1", "b1", "w2", "b2", "w3", "b3"))
    stream_bytes = tile_n * (d_in + d_out) * 4
    act_bytes = tile_n * (h1_p + h2_p) * 4
    vmem_limit_bytes = int(min(
        48 << 20,                                        # < v7x 64 MiB physical
        max(8 << 20, 2 * resident_bytes + 4 * stream_bytes + 2 * act_bytes + (4 << 20)),
    ))

    y_pad = pl.pallas_call(
        functools.partial(_mlp_kernel, compute_dtype=compute_dtype),
        out_shape=jax.ShapeDtypeStruct((n_pad, d_out), jnp.float32),
        grid=grid,
        in_specs=[x_spec] + w_specs,
        out_specs=out_spec,
        compiler_params=pltpu.CompilerParams(
            dimension_semantics=("parallel",),   # batch tiles split across TCs
            vmem_limit_bytes=vmem_limit_bytes,
        ),
    )(x_in, prep["w1"], prep["b1"], prep["w2"], prep["b2"], prep["w3"], prep["b3"])

    return y_pad[:n, :] if n_pad != n else y_pad


def init_params(key, d_in, h1, h2, d_out):
    """Deterministic PyTorch-Linear-style uniform init (kaiming-uniform bounds)."""
    ks = jax.random.split(key, 6)

    def lin_init(kw, kb, fan_in, fan_out):
        bound = 1.0 / (fan_in ** 0.5)
        w = jax.random.uniform(kw, (fan_out, fan_in), jnp.float32, -bound, bound)
        b = jax.random.uniform(kb, (fan_out,), jnp.float32, -bound, bound)
        return w, b

    w1, b1 = lin_init(ks[0], ks[1], d_in, h1)
    w2, b2 = lin_init(ks[2], ks[3], h1, h2)
    w3, b3 = lin_init(ks[4], ks[5], h2, d_out)
    return {"w1": w1, "b1": b1, "w2": w2, "b2": b2, "w3": w3, "b3": b3}


if __name__ == "__main__":
    # Module-consistent shapes; ragged batch (300) exercises batch padding and
    # the forced >=2-tile split (grid=(2,), 152 rows/tile).
    N, D_in, H1, H2, D_out = 300, 32, 64, 48, 16

    key = jax.random.PRNGKey(0)
    kx, kp = jax.random.split(key)
    x = jax.random.normal(kx, (N, D_in), jnp.float32)
    params = init_params(kp, D_in, H1, H2, D_out)

    prep = prepare_params(params)            # one-time weight prep (transpose/pad/cast)
    y = two_layer_net_forward(x, prep)       # default tile_n=512 -> 2 balanced tiles
    jax.block_until_ready(y)

    # Pure-JAX reference with the same bf16-compute / f32-accumulate semantics.
    bf = jnp.bfloat16
    xb = x.astype(bf)
    w1b, w2b, w3b = (params[k].astype(bf) for k in ("w1", "w2", "w3"))
    h1 = jnp.maximum(
        jnp.dot(xb, w1b.T, preferred_element_type=jnp.float32) + params["b1"], 0.0)
    h2 = jnp.maximum(
        jnp.dot(h1.astype(bf), w2b.T, preferred_element_type=jnp.float32) + params["b2"], 0.0)
    y_ref = jnp.dot(h2.astype(bf), w3b.T, preferred_element_type=jnp.float32) + params["b3"]

    assert y.shape == (N, D_out)
    assert jnp.allclose(y, y_ref, atol=1e-2, rtol=1e-2)

    print("KERNEL_OK")
</pallas_src>

<mosaic_0001>
module attributes {stable_mosaic.version = 11 : i64} {
  func.func @_mlp_kernel(%arg0: i32, %arg1: memref<152x32xf32, #tpu.memory_space<vmem>>, %arg2: memref<32x128xbf16, #tpu.memory_space<vmem>>, %arg3: memref<1x128xf32, #tpu.memory_space<vmem>>, %arg4: memref<128x128xbf16, #tpu.memory_space<vmem>>, %arg5: memref<1x128xf32, #tpu.memory_space<vmem>>, %arg6: memref<128x16xbf16, #tpu.memory_space<vmem>>, %arg7: memref<1x16xf32, #tpu.memory_space<vmem>>, %arg8: memref<152x16xf32, #tpu.memory_space<vmem>>) attributes {dimension_semantics = [#tpu.dimension_semantics<parallel>], iteration_bounds = array<i64: 2>, scalar_prefetch = 0 : i64, scratch_operands = 0 : i64, tpu.core_type = #tpu.core_type<tc>, window_params = [{transform_indices = @transform_0, window_bounds = array<i64: 152, 32>}, {pipeline_mode = #tpu.pipeline_mode<synchronous>, transform_indices = @transform_1, window_bounds = array<i64: 32, 128>}, {pipeline_mode = #tpu.pipeline_mode<synchronous>, transform_indices = @transform_2, window_bounds = array<i64: 1, 128>}, {pipeline_mode = #tpu.pipeline_mode<synchronous>, transform_indices = @transform_3, window_bounds = array<i64: 128, 128>}, {pipeline_mode = #tpu.pipeline_mode<synchronous>, transform_indices = @transform_4, window_bounds = array<i64: 1, 128>}, {pipeline_mode = #tpu.pipeline_mode<synchronous>, transform_indices = @transform_5, window_bounds = array<i64: 128, 16>}, {pipeline_mode = #tpu.pipeline_mode<synchronous>, transform_indices = @transform_6, window_bounds = array<i64: 1, 16>}, {transform_indices = @transform_7, window_bounds = array<i64: 152, 16>}]} {
    %c0 = arith.constant 0 : index
    %c0_0 = arith.constant 0 : index
    %0 = vector.load %arg1[%c0, %c0_0] : memref<152x32xf32, #tpu.memory_space<vmem>>, vector<152x32xf32>
    %1 = arith.truncf %0 : vector<152x32xf32> to vector<152x32xbf16>
    %c0_1 = arith.constant 0 : index
    %c0_2 = arith.constant 0 : index
    %2 = vector.load %arg2[%c0_1, %c0_2] : memref<32x128xbf16, #tpu.memory_space<vmem>>, vector<32x128xbf16>
    %cst = arith.constant dense<0.000000e+00> : vector<152x128xf32>
    %3 = tpu.matmul %1, %2, %cst {dimension_numbers = #tpu.dot_dimension_numbers<[1], [0], [0], [1], [0, 0, 1, 1], [], []>} : vector<152x32xbf16>, vector<32x128xbf16>, vector<152x128xf32> -> vector<152x128xf32>
    %c0_3 = arith.constant 0 : index
    %c0_4 = arith.constant 0 : index
    %4 = vector.load %arg3[%c0_3, %c0_4] : memref<1x128xf32, #tpu.memory_space<vmem>>, vector<1x128xf32>
    %5 = vector.broadcast %4 : vector<1x128xf32> to vector<152x128xf32>
    %6 = arith.addf %3, %5 : vector<152x128xf32>
    %cst_5 = arith.constant 0.000000e+00 : f32
    %7 = vector.broadcast %cst_5 : f32 to vector<152x128xf32>
    %8 = arith.maximumf %6, %7 : vector<152x128xf32>
    %9 = arith.truncf %8 : vector<152x128xf32> to vector<152x128xbf16>
    %c0_6 = arith.constant 0 : index
    %c0_7 = arith.constant 0 : index
    %10 = vector.load %arg4[%c0_6, %c0_7] : memref<128x128xbf16, #tpu.memory_space<vmem>>, vector<128x128xbf16>
    %cst_8 = arith.constant dense<0.000000e+00> : vector<152x128xf32>
    %11 = tpu.matmul %9, %10, %cst_8 {dimension_numbers = #tpu.dot_dimension_numbers<[1], [0], [0], [1], [0, 0, 1, 1], [], []>} : vector<152x128xbf16>, vector<128x128xbf16>, vector<152x128xf32> -> vector<152x128xf32>
    %c0_9 = arith.constant 0 : index
    %c0_10 = arith.constant 0 : index
    %12 = vector.load %arg5[%c0_9, %c0_10] : memref<1x128xf32, #tpu.memory_space<vmem>>, vector<1x128xf32>
    %13 = vector.broadcast %12 : vector<1x128xf32> to vector<152x128xf32>
    %14 = arith.addf %11, %13 : vector<152x128xf32>
    %cst_11 = arith.constant 0.000000e+00 : f32
    %15 = vector.broadcast %cst_11 : f32 to vector<152x128xf32>
    %16 = arith.maximumf %14, %15 : vector<152x128xf32>
    %17 = arith.truncf %16 : vector<152x128xf32> to vector<152x128xbf16>
    %c0_12 = arith.constant 0 : index
    %c0_13 = arith.constant 0 : index
    %18 = vector.load %arg6[%c0_12, %c0_13] : memref<128x16xbf16, #tpu.memory_space<vmem>>, vector<128x16xbf16>
    %cst_14 = arith.constant dense<0.000000e+00> : vector<152x16xf32>
    %19 = tpu.matmul %17, %18, %cst_14 {dimension_numbers = #tpu.dot_dimension_numbers<[1], [0], [0], [1], [0, 0, 1, 1], [], []>} : vector<152x128xbf16>, vector<128x16xbf16>, vector<152x16xf32> -> vector<152x16xf32>
    %c0_15 = arith.constant 0 : index
    %c0_16 = arith.constant 0 : index
    %20 = vector.load %arg7[%c0_15, %c0_16] : memref<1x16xf32, #tpu.memory_space<vmem>>, vector<1x16xf32>
    %21 = vector.broadcast %20 : vector<1x16xf32> to vector<152x16xf32>
    %22 = arith.addf %19, %21 : vector<152x16xf32>
    %c0_17 = arith.constant 0 : index
    %c0_18 = arith.constant 0 : index
    %23 = vector.load %arg8[%c0_17, %c0_18] : memref<152x16xf32, #tpu.memory_space<vmem>>, vector<152x16xf32>
    tpu.vector_store %arg8[%c0_17, %c0_18], %22 {strides = array<i32>} : memref<152x16xf32, #tpu.memory_space<vmem>>, vector<152x16xf32>,
    return
  }
  func.func @transform_0(%arg0: i32) -> (i32, i32) {
    %c0_i32 = arith.constant 0 : i32
    %c0_i32_0 = arith.constant 0 : i32
    return %arg0, %c0_i32 : i32, i32
  }
  func.func @transform_1(%arg0: i32) -> (i32, i32) {
    %c0_i32 = arith.constant 0 : i32
    %c0_i32_0 = arith.constant 0 : i32
    %c0_i32_1 = arith.constant 0 : i32
    return %c0_i32, %c0_i32_0 : i32, i32
  }
  func.func @transform_2(%arg0: i32) -> (i32, i32) {
    %c0_i32 = arith.constant 0 : i32
    %c0_i32_0 = arith.constant 0 : i32
    %c0_i32_1 = arith.constant 0 : i32
    return %c0_i32, %c0_i32_0 : i32, i32
  }
  func.func @transform_3(%arg0: i32) -> (i32, i32) {
    %c0_i32 = arith.constant 0 : i32
    %c0_i32_0 = arith.constant 0 : i32
    %c0_i32_1 = arith.constant 0 : i32
    return %c0_i32, %c0_i32_0 : i32, i32
  }
  func.func @transform_4(%arg0: i32) -> (i32, i32) {
    %c0_i32 = arith.constant 0 : i32
    %c0_i32_0 = arith.constant 0 : i32
    %c0_i32_1 = arith.constant 0 : i32
    return %c0_i32, %c0_i32_0 : i32, i32
  }
  func.func @transform_5(%arg0: i32) -> (i32, i32) {
    %c0_i32 = arith.constant 0 : i32
    %c0_i32_0 = arith.constant 0 : i32
    %c0_i32_1 = arith.constant 0 : i32
    return %c0_i32, %c0_i32_0 : i32, i32
  }
  func.func @transform_6(%arg0: i32) -> (i32, i32) {
    %c0_i32 = arith.constant 0 : i32
    %c0_i32_0 = arith.constant 0 : i32
    %c0_i32_1 = arith.constant 0 : i32
    return %c0_i32, %c0_i32_0 : i32, i32
  }
  func.func @transform_7(%arg0: i32) -> (i32, i32) {
    %c0_i32 = arith.constant 0 : i32
    %c0_i32_0 = arith.constant 0 : i32
    return %arg0, %c0_i32 : i32, i32
  }
}

</mosaic_0001>

<llo_original>
// kernel: tpu_custom_call.1
$region0: #{tpu_custom_call.1}
  #allocation0 [shape = 'u32[]', space=smem, size = 0x4, offset = 0x4, fixed_abs, tag = 'smem constant byte address 0x4 - core index']
  #allocation1 [shape = 'u32[72,128]{1,0:T(1,128)}', space=vmem, size = 0x9000, scoped, tag = 'internal scratch']
  %s0 = inlined_call_operand.vmem [shape: f32[304,32], index: 0, kind: input, shape index: {}]
  %s1 = inlined_call_operand.vmem [shape: bf16[32,128], index: 1, kind: input, shape index: {}]
  %s2 = inlined_call_operand.vmem [shape: f32[1,128], index: 2, kind: input, shape index: {}]
  %s3 = inlined_call_operand.vmem [shape: bf16[128,128], index: 3, kind: input, shape index: {}]
  %s4 = inlined_call_operand.vmem [shape: f32[1,128], index: 4, kind: input, shape index: {}]
  %s5 = inlined_call_operand.vmem [shape: bf16[128,16], index: 5, kind: input, shape index: {}]
  %s6 = inlined_call_operand.vmem [shape: f32[1,16], index: 6, kind: input, shape index: {}]
  %s7 = inlined_call_operand.vmem [shape: f32[304,16], index: 7, kind: output, shape index: {}]
  %s8 = sld [smem:[#allocation0]]
  $region61: #{tpu_custom_call.1} parent=0
    _
  %s10 = ssub.s32 1, %s8
  %s11 = scalar_select 0, %s10, %s8
  loop: start=0, step=1, limit=4
  $region2: #{tpu_custom_call.1} parent=0 // loop_pre_header
    _
  $region3: #{tpu_custom_call.1} parent=0 // loop_header
    %s13 = sphi 0, %s17
    %p14 = scmp.ge.s32.totalorder %s13, 4
    %s23 = sphi 0, %s25
    %s26 = sphi 0, %s23
    %s27 = sphi 0, %s26
    %s43 = sphi 0, %s27
    %s47 = sphi 0, %s47
    %s49 = sphi 0, %s47
    %s50 = sphi 0, %s49
    %s64 = sphi 0, %s50
    %s68 = sphi 0, %s68
    %s70 = sphi 0, %s68
    %s71 = sphi 0, %s70
    %s85 = sphi 0, %s71
    %s89 = sphi 0, %s89
    %s91 = sphi 0, %s89
    %s92 = sphi 0, %s91
    %s106 = sphi 0, %s92
    %s110 = sphi 0, %s110
    %s112 = sphi 0, %s110
    %s113 = sphi 0, %s112
    %s127 = sphi 0, %s113
    %s131 = sphi 0, %s131
    %s133 = sphi 0, %s131
    %s134 = sphi 0, %s133
    %s148 = sphi 0, %s134
    %s152 = sphi 0, %s152
    %s154 = sphi 0, %s152
    %s155 = sphi 0, %s154
    %s169 = sphi 0, %s155
    %s175 = sphi 0, %s177
    %s178 = sphi 0, %s175
    %s179 = sphi 0, %s178
    %s195 = sphi 0, %s179
  $region4: #{tpu_custom_call.1} parent=0 // loop_header_branch
    %16 = sbr.rel (%p14) target = $region8
  $region5: #{tpu_custom_call.1} parent=0 // loop_body
    %s18 = ssub.s32 %s13, 1
    %s19 = ssub.s32 %s13, 2
    %s20 = sadd.s32 %s13, 1
    %s21 = ssub.s32 %s13, %s20
    %p22 = scmp.eq.s32.totalorder %s21, 0
    %s24 = sadd.s32 %s23, 1
    %s25 = scalar_select %p22, %s23, %s24
    %p28 = pneg %p22
    %p29 = scmp.eq.s32.totalorder %s13, 1
    %p30 = por %p28, %p29
    %p31 = scmp.ne.s32.totalorder %s23, %s26
    %p32 = scmp.eq.s32.totalorder %s13, 0
    %p33 = por %p31, %p32
    %p34 = scmp.ne.s32.totalorder %s23, %s26
    %p35 = scmp.eq.s32.totalorder %s18, 1
    %p36 = por %p34, %p35
    %p37 = scmp.ne.s32.totalorder %s26, %s27
    %p38 = scmp.eq.s32.totalorder %s18, 0
    %p39 = por %p37, %p38
    %p40 = scmp.ne.s32.totalorder %s26, %s27
    %p41 = scmp.eq.s32.totalorder %s19, 1
    %p42 = por %p40, %p41
    %p44 = scmp.ne.s32.totalorder %s27, %s43
    %p45 = scmp.eq.s32.totalorder %s19, 0
    %p46 = por %p44, %p45
    %s48 = sadd.s32 %s47, 1
    %p51 = scmp.eq.s32.totalorder %s13, 1
    %p52 = scmp.ne.s32.totalorder %s47, %s49
    %p53 = scmp.eq.s32.totalorder %s13, 0
    %p54 = por %p52, %p53
    %p55 = scmp.ne.s32.totalorder %s47, %s49
    %p56 = scmp.eq.s32.totalorder %s18, 1
    %p57 = por %p55, %p56
    %p58 = scmp.ne.s32.totalorder %s49, %s50
    %p59 = scmp.eq.s32.totalorder %s18, 0
    %p60 = por %p58, %p59
    %p61 = scmp.ne.s32.totalorder %s49, %s50
    %p62 = scmp.eq.s32.totalorder %s19, 1
    %p63 = por %p61, %p62
    %p65 = scmp.ne.s32.totalorder %s50, %s64
    %p66 = scmp.eq.s32.totalorder %s19, 0
    %p67 = por %p65, %p66
    %s69 = sadd.s32 %s68, 1
    %p72 = scmp.eq.s32.totalorder %s13, 1
    %p73 = scmp.ne.s32.totalorder %s68, %s70
    %p74 = scmp.eq.s32.totalorder %s13, 0
    %p75 = por %p73, %p74
    %p76 = scmp.ne.s32.totalorder %s68, %s70
    %p77 = scmp.eq.s32.totalorder %s18, 1
    %p78 = por %p76, %p77
    %p79 = scmp.ne.s32.totalorder %s70, %s71
    %p80 = scmp.eq.s32.totalorder %s18, 0
    %p81 = por %p79, %p80
    %p82 = scmp.ne.s32.totalorder %s70, %s71
    %p83 = scmp.eq.s32.totalorder %s19, 1
    %p84 = por %p82, %p83
    %p86 = scmp.ne.s32.totalorder %s71, %s85
    %p87 = scmp.eq.s32.totalorder %s19, 0
    %p88 = por %p86, %p87
    %s90 = sadd.s32 %s89, 1
    %p93 = scmp.eq.s32.totalorder %s13, 1
    %p94 = scmp.ne.s32.totalorder %s89, %s91
    %p95 = scmp.eq.s32.totalorder %s13, 0
    %p96 = por %p94, %p95
    %p97 = scmp.ne.s32.totalorder %s89, %s91
    %p98 = scmp.eq.s32.totalorder %s18, 1
    %p99 = por %p97, %p98
    %p100 = scmp.ne.s32.totalorder %s91, %s92
    %p101 = scmp.eq.s32.totalorder %s18, 0
    %p102 = por %p100, %p101
    %p103 = scmp.ne.s32.totalorder %s91, %s92
    %p104 = scmp.eq.s32.totalorder %s19, 1
    %p105 = por %p103, %p104
    %p107 = scmp.ne.s32.totalorder %s92, %s106
    %p108 = scmp.eq.s32.totalorder %s19, 0
    %p109 = por %p107, %p108
    %s111 = sadd.s32 %s110, 1
    %p114 = scmp.eq.s32.totalorder %s13, 1
    %p115 = scmp.ne.s32.totalorder %s110, %s112
    %p116 = scmp.eq.s32.totalorder %s13, 0
    %p117 = por %p115, %p116
    %p118 = scmp.ne.s32.totalorder %s110, %s112
    %p119 = scmp.eq.s32.totalorder %s18, 1
    %p120 = por %p118, %p119
    %p121 = scmp.ne.s32.totalorder %s112, %s113
    %p122 = scmp.eq.s32.totalorder %s18, 0
    %p123 = por %p121, %p122
    %p124 = scmp.ne.s32.totalorder %s112, %s113
    %p125 = scmp.eq.s32.totalorder %s19, 1
    %p126 = por %p124, %p125
    %p128 = scmp.ne.s32.totalorder %s113, %s127
    %p129 = scmp.eq.s32.totalorder %s19, 0
    %p130 = por %p128, %p129
    %s132 = sadd.s32 %s131, 1
    %p135 = scmp.eq.s32.totalorder %s13, 1
    %p136 = scmp.ne.s32.totalorder %s131, %s133
    %p137 = scmp.eq.s32.totalorder %s13, 0
    %p138 = por %p136, %p137
    %p139 = scmp.ne.s32.totalorder %s131, %s133
    %p140 = scmp.eq.s32.totalorder %s18, 1
    %p141 = por %p139, %p140
    %p142 = scmp.ne.s32.totalorder %s133, %s134
    %p143 = scmp.eq.s32.totalorder %s18, 0
    %p144 = por %p142, %p143
    %p145 = scmp.ne.s32.totalorder %s133, %s134
    %p146 = scmp.eq.s32.totalorder %s19, 1
    %p147 = por %p145, %p146
    %p149 = scmp.ne.s32.totalorder %s134, %s148
    %p150 = scmp.eq.s32.totalorder %s19, 0
    %p151 = por %p149, %p150
    %s153 = sadd.s32 %s152, 1
    %p156 = scmp.eq.s32.totalorder %s13, 1
    %p157 = scmp.ne.s32.totalorder %s152, %s154
    %p158 = scmp.eq.s32.totalorder %s13, 0
    %p159 = por %p157, %p158
    %p160 = scmp.ne.s32.totalorder %s152, %s154
    %p161 = scmp.eq.s32.totalorder %s18, 1
    %p162 = por %p160, %p161
    %p163 = scmp.ne.s32.totalorder %s154, %s155
    %p164 = scmp.eq.s32.totalorder %s18, 0
    %p165 = por %p163, %p164
    %p166 = scmp.ne.s32.totalorder %s154, %s155
    %p167 = scmp.eq.s32.totalorder %s19, 1
    %p168 = por %p166, %p167
    %p170 = scmp.ne.s32.totalorder %s155, %s169
    %p171 = scmp.eq.s32.totalorder %s19, 0
    %p172 = por %p170, %p171
    %s173 = ssub.s32 %s13, %s20
    %p174 = scmp.eq.s32.totalorder %s173, 0
    %s176 = sadd.s32 %s175, 1
    %s177 = scalar_select %p174, %s175, %s176
    %p180 = pneg %p174
    %p181 = scmp.eq.s32.totalorder %s13, 1
    %p182 = por %p180, %p181
    %p183 = scmp.ne.s32.totalorder %s175, %s178
    %p184 = scmp.eq.s32.totalorder %s13, 0
    %p185 = por %p183, %p184
    %p186 = scmp.ne.s32.totalorder %s175, %s178
    %p187 = scmp.eq.s32.totalorder %s18, 1
    %p188 = por %p186, %p187
    %p189 = scmp.ne.s32.totalorder %s178, %s179
    %p190 = scmp.eq.s32.totalorder %s18, 0
    %p191 = por %p189, %p190
    %p192 = scmp.ne.s32.totalorder %s178, %s179
    %p193 = scmp.eq.s32.totalorder %s19, 1
    %p194 = por %p192, %p193
    %p196 = scmp.ne.s32.totalorder %s179, %s195
    %p197 = scmp.eq.s32.totalorder %s19, 0
    %p198 = por %p196, %p197
    %p199 = scmp.le.s32.totalorder 1, %s13
    %p200 = scmp.lt.s32.totalorder %s13, 3
    %p201 = pnand %p199, %p200
    %p202 = pneg %p201
    // Predicated region
    $region9: #{tpu_custom_call.1} parent=5 // pred_check
      _
    $region10: #{tpu_custom_call.1} parent=5 // pred_check_branch
      %204 = sbr.rel (%p201) target = $region12
    $region11: #{tpu_custom_call.1} parent=5 // pred_region
      %s205 = ssub.s32 %s13, 1
      // Predicated region
      $region13: #{tpu_custom_call.1} parent=11 // pred_check
        %p206 = pneg %p60
      $region14: #{tpu_custom_call.1} parent=11 // pred_check_branch
        %208 = sbr.rel (%p206) target = $region16
      $region15: #{tpu_custom_call.1} parent=11 // pred_region
        _
      $region16: #{tpu_custom_call.1} parent=11 // pred_fallthru
        _
      // Predicated region
      $region17: #{tpu_custom_call.1} parent=11 // pred_check
        %p209 = pneg %p81
      $region18: #{tpu_custom_call.1} parent=11 // pred_check_branch
        %211 = sbr.rel (%p209) target = $region20
      $region19: #{tpu_custom_call.1} parent=11 // pred_region
        _
      $region20: #{tpu_custom_call.1} parent=11 // pred_fallthru
        _
      // Predicated region
      $region21: #{tpu_custom_call.1} parent=11 // pred_check
        %p212 = pneg %p102
      $region22: #{tpu_custom_call.1} parent=11 // pred_check_branch
        %214 = sbr.rel (%p212) target = $region24
      $region23: #{tpu_custom_call.1} parent=11 // pred_region
        _
      $region24: #{tpu_custom_call.1} parent=11 // pred_fallthru
        _
      // Predicated region
      $region25: #{tpu_custom_call.1} parent=11 // pred_check
        %p215 = pneg %p123
      $region26: #{tpu_custom_call.1} parent=11 // pred_check_branch
        %217 = sbr.rel (%p215) target = $region28
      $region27: #{tpu_custom_call.1} parent=11 // pred_region
        _
      $region28: #{tpu_custom_call.1} parent=11 // pred_fallthru
        _
      // Predicated region
      $region29: #{tpu_custom_call.1} parent=11 // pred_check
        %p218 = pneg %p144
      $region30: #{tpu_custom_call.1} parent=11 // pred_check_branch
        %220 = sbr.rel (%p218) target = $region32
      $region31: #{tpu_custom_call.1} parent=11 // pred_region
        _
      $region32: #{tpu_custom_call.1} parent=11 // pred_fallthru
        _
      // Predicated region
      $region33: #{tpu_custom_call.1} parent=11 // pred_check
        %p221 = pneg %p165
      $region34: #{tpu_custom_call.1} parent=11 // pred_check_branch
        %223 = sbr.rel (%p221) target = $region36
      $region35: #{tpu_custom_call.1} parent=11 // pred_region
        _
      $region36: #{tpu_custom_call.1} parent=11 // pred_fallthru
        _
    $region12: #{tpu_custom_call.1} parent=5 // pred_fallthru
      _
    %p224 = scmp.lt.s32.totalorder %s13, 2
    // Predicated region
    $region37: #{tpu_custom_call.1} parent=5 // pred_check
      %p225 = pneg %p224
    $region38: #{tpu_custom_call.1} parent=5 // pred_check_branch
      %227 = sbr.rel (%p225) target = $region40
    $region39: #{tpu_custom_call.1} parent=5 // pred_region
      // Predicated region
      $region41: #{tpu_custom_call.1} parent=39 // pred_check
        %p228 = pneg %p33
      $region42: #{tpu_custom_call.1} parent=39 // pred_check_branch
        %230 = sbr.rel (%p228) target = $region44
      $region43: #{tpu_custom_call.1} parent=39 // pred_region
        %s231 = smul.u32 19, %s13
        %p232 = scmp.lt.s32.totalorder %s231, 37
        %s233 = scalar_select %p232, %s231, 37
        %s234 = smul.addr %s233, 8
        %s235 = scalar_lea.vmem %s0, %s234
        %s236 = smul.u32 19, %s13
      $region44: #{tpu_custom_call.1} parent=39 // pred_fallthru
        _
    $region40: #{tpu_custom_call.1} parent=5 // pred_fallthru
      _
    %p237 = scmp.le.s32.totalorder 1, %s13
    %p238 = scmp.lt.s32.totalorder %s13, 3
    %p239 = pnand %p237, %p238
    %p240 = pneg %p239
    // Predicated region
    $region45: #{tpu_custom_call.1} parent=5 // pred_check
      _
    $region46: #{tpu_custom_call.1} parent=5 // pred_check_branch
      %242 = sbr.rel (%p239) target = $region48
    $region47: #{tpu_custom_call.1} parent=5 // pred_region
      %s243 = ssub.s32 %s13, 1
      %s244 = smul.u32 19, %s18
      %p245 = scmp.lt.s32.totalorder %s244, 37
      %s246 = scalar_select %p245, %s244, 37
      %s247 = smul.addr %s246, 8
      %s248 = scalar_lea.vmem %s0, %s247
      %p249 = pneg %p39
      %p250 = pneg %p36
      %p251 = pneg %p60
      %p252 = pneg %p57
      %p253 = pneg %p81
      %p254 = pneg %p78
      %p255 = pneg %p102
      %p256 = pneg %p99
      %p257 = pneg %p123
      %p258 = pneg %p120
      %p259 = pneg %p144
      %p260 = pneg %p141
      %p261 = pneg %p165
      %p262 = pneg %p162
      %p263 = pneg %p191
      %p264 = pneg %p188
      %s265 = smul.u32 19, %s18
      %p266 = scmp.lt.s32.totalorder %s265, 37
      %s267 = scalar_select %p266, %s265, 37
      %s268 = smul.addr %s267, 8
      %s269 = scalar_lea.vmem %s7, %s268
      %s270 = smul.u32 19, %s18
      %p271 = scmp.lt.s32.totalorder %s270, 37
      %s272 = scalar_select %p271, %s270, 37
      %s273 = smul.addr %s272, 8
      %s274 = scalar_lea.vmem %s0, %s273
      %s275 = smul.u32 19, %s18
      %s276 = smul.u32 19, %s18
      %p277 = scmp.lt.s32.totalorder %s276, 37
      %s278 = scalar_select %p277, %s276, 37
      %s279 = smul.addr %s278, 8
      %s280 = scalar_lea.vmem %s7, %s279
      %s281 = smul.u32 19, %s18
      %v283 = vld [vmem:[%s274] sm:$0xff]
      %v284 = vld [vmem:[%s274 + $0x8] sm:$0xff]
      %v285 = vld [vmem:[%s274 + $0x10] sm:$0xff]
      %v286 = vld [vmem:[%s274 + $0x18] sm:$0xff]
      %v287 = vld [vmem:[%s274 + $0x20] sm:$0xff]
      %v288 = vld [vmem:[%s274 + $0x28] sm:$0xff]
      %v289 = vld [vmem:[%s274 + $0x30] sm:$0xff]
      %v290 = vld [vmem:[%s274 + $0x38] sm:$0xff]
      %v291 = vld [vmem:[%s274 + $0x40] sm:$0xff]
      %v292 = vld [vmem:[%s274 + $0x48] sm:$0xff]
      %v293 = vld [vmem:[%s274 + $0x50] sm:$0xff]
      %v294 = vld [vmem:[%s274 + $0x58] sm:$0xff]
      %v295 = vld [vmem:[%s274 + $0x60] sm:$0xff]
      %v296 = vld [vmem:[%s274 + $0x68] sm:$0xff]
      %v297 = vld [vmem:[%s274 + $0x70] sm:$0xff]
      %v298 = vld [vmem:[%s274 + $0x78] sm:$0xff]
      %v299 = vld [vmem:[%s274 + $0x80] sm:$0xff]
      %v300 = vld [vmem:[%s274 + $0x88] sm:$0xff]
      %v301 = vld [vmem:[%s274 + $0x90] sm:$0xff]
      %v302 = vpack.c.bf16 %v284, %v283
      %v303 = vpack.c.bf16 %v286, %v285
      %v304 = vpack.c.bf16 %v288, %v287
      %v305 = vpack.c.bf16 %v290, %v289
      %v306 = vpack.c.bf16 %v292, %v291
      %v307 = vpack.c.bf16 %v294, %v293
      %v308 = vpack.c.bf16 %v296, %v295
      %v309 = vpack.c.bf16 %v298, %v297
      %v310 = vpack.c.bf16 %v300, %v299
      %v311 = vpack.c.bf16 %v301, %v301
      %v312 = vld [vmem:[%s1] sm:$0xf]
      %v313 = vld [vmem:[%s1 + $0x4] sm:$0xf]
      %v314 = vld [vmem:[%s1 + $0x8] sm:$0xf]
      %v315 = vld [vmem:[%s1 + $0xc] sm:$0xf]
      %v316 = vld [vmem:[%s2] sm:$0x1]
      %v318 = vperm.slane %v316, 0
      %v324 = vunpack.c.l.b16 %v312
      %v325 = vunpack.c.l.b16 %v313
      %v326 = vunpack.c.l.b16 %v314
      %v327 = vunpack.c.l.b16 %v315
      %v328 = vpack.c.b16 %v325, %v324
      %v329 = vpack.c.b16 %v327, %v326
      %vm332 = vcmask 261120
      %v334 = vsel %vm332, %v302, 0
      %v337 = vsel %vm332, %v303, 0
      %v340 = vsel %vm332, %v304, 0
      %v343 = vsel %vm332, %v305, 0
      %v346 = vsel %vm332, %v306, 0
      %v349 = vsel %vm332, %v307, 0
      %v352 = vsel %vm332, %v308, 0
      %v355 = vsel %vm332, %v309, 0
      %v358 = vsel %vm332, %v310, 0
      %v361 = vsel %vm332, %v311, 0
      %363 = vmatpush.bf16.msra.mxu0 0
      %364 = vmatpush.bf16.msra.mxu0 0
      %365 = vmatpush.bf16.msra.mxu0 0
      %366 = vmatpush.bf16.msra.mxu0 0
      %367 = vmatpush.bf16.msra.mxu0 0
      %368 = vmatpush.bf16.msra.mxu0 0
      %369 = vmatpush.bf16.msra.mxu0 %v329
      %370 = vmatpush.bf16.msra.mxu0 %v328
      %371 = vmatmul.bf16.gmra.mxu0 %v334
      %v372 = vpop.f32.mrf.mxu0
      %v373 = vadd.f32 %v318, %v372
      %v374 = vpop.f32.mrf.mxu0
      %v375 = vadd.f32 %v318, %v374
      %376 = vmatmul.bf16.gmra.mxu0 %v337
      %v377 = vpop.f32.mrf.mxu0
      %v378 = vadd.f32 %v318, %v377
      %v379 = vpop.f32.mrf.mxu0
      %v380 = vadd.f32 %v318, %v379
      %381 = vmatmul.bf16.gmra.mxu0 %v340
      %v382 = vpop.f32.mrf.mxu0
      %v383 = vadd.f32 %v318, %v382
      %v384 = vpop.f32.mrf.mxu0
      %v385 = vadd.f32 %v318, %v384
      %386 = vmatmul.bf16.gmra.mxu0 %v343
      %v387 = vpop.f32.mrf.mxu0
      %v388 = vadd.f32 %v318, %v387
      %v389 = vpop.f32.mrf.mxu0
      %v390 = vadd.f32 %v318, %v389
      %391 = vmatmul.bf16.gmra.mxu0 %v346
      %v392 = vpop.f32.mrf.mxu0
      %v393 = vadd.f32 %v318, %v392
      %v394 = vpop.f32.mrf.mxu0
      %v395 = vadd.f32 %v318, %v394
      %396 = vmatmul.bf16.gmra.mxu0 %v349
      %v397 = vpop.f32.mrf.mxu0
      %v398 = vadd.f32 %v318, %v397
      %v399 = vpop.f32.mrf.mxu0
      %v400 = vadd.f32 %v318, %v399
      %401 = vmatmul.bf16.gmra.mxu0 %v352
      %v402 = vpop.f32.mrf.mxu0
      %v403 = vadd.f32 %v318, %v402
      %v404 = vpop.f32.mrf.mxu0
      %v405 = vadd.f32 %v318, %v404
      %406 = vmatmul.bf16.gmra.mxu0 %v355
      %v407 = vpop.f32.mrf.mxu0
      %v408 = vadd.f32 %v318, %v407
      %v409 = vpop.f32.mrf.mxu0
      %v410 = vadd.f32 %v318, %v409
      %411 = vmatmul.bf16.gmra.mxu0 %v358
      %v412 = vpop.f32.mrf.mxu0
      %v413 = vadd.f32 %v318, %v412
      %v414 = vpop.f32.mrf.mxu0
      %v415 = vadd.f32 %v318, %v414
      %416 = vmatmul.bf16.gmra.mxu0 %v361
      %v417 = vpop.f32.mrf.mxu0
      %v418 = vadd.f32 %v318, %v417
      %v419 = vpop.f32.mrf.mxu0
      %420 = vdwg.mxu0
      %v421 = vmax.f32 %v373, 0.0
      %v422 = vmax.f32 %v375, 0.0
      %v423 = vmax.f32 %v378, 0.0
      %v424 = vmax.f32 %v380, 0.0
      %v425 = vmax.f32 %v383, 0.0
      %v426 = vmax.f32 %v385, 0.0
      %v427 = vmax.f32 %v388, 0.0
      %v428 = vmax.f32 %v390, 0.0
      %v429 = vmax.f32 %v393, 0.0
      %v430 = vmax.f32 %v395, 0.0
      %v431 = vmax.f32 %v398, 0.0
      %v432 = vmax.f32 %v400, 0.0
      %v433 = vmax.f32 %v403, 0.0
      %v434 = vmax.f32 %v405, 0.0
      %v435 = vmax.f32 %v408, 0.0
      %v436 = vmax.f32 %v410, 0.0
      %v437 = vmax.f32 %v413, 0.0
      %v438 = vmax.f32 %v415, 0.0
      %v439 = vmax.f32 %v418, 0.0
      %v440 = vpack.c.bf16 %v422, %v421
      %v441 = vpack.c.bf16 %v424, %v423
      %v442 = vpack.c.bf16 %v426, %v425
      %v443 = vpack.c.bf16 %v428, %v427
      %v444 = vpack.c.bf16 %v430, %v429
      %v445 = vpack.c.bf16 %v432, %v431
      %v446 = vpack.c.bf16 %v434, %v433
      %v447 = vpack.c.bf16 %v436, %v435
      %v448 = vpack.c.bf16 %v438, %v437
      %v449 = vpack.c.bf16 %v439, %v439
      %v450 = vld [vmem:[%s3] sm:$0xf]
      %v451 = vld [vmem:[%s3 + $0x4] sm:$0xf]
      %v452 = vld [vmem:[%s3 + $0x8] sm:$0xf]
      %v453 = vld [vmem:[%s3 + $0xc] sm:$0xf]
      %v454 = vld [vmem:[%s3 + $0x10] sm:$0xf]
      %v455 = vld [vmem:[%s3 + $0x14] sm:$0xf]
      %v456 = vld [vmem:[%s3 + $0x18] sm:$0xf]
      %v457 = vld [vmem:[%s3 + $0x1c] sm:$0xf]
      %v458 = vld [vmem:[%s3 + $0x20] sm:$0xf]
      %v459 = vld [vmem:[%s3 + $0x24] sm:$0xf]
      %v460 = vld [vmem:[%s3 + $0x28] sm:$0xf]
      %v461 = vld [vmem:[%s3 + $0x2c] sm:$0xf]
      %v462 = vld [vmem:[%s3 + $0x30] sm:$0xf]
      %v463 = vld [vmem:[%s3 + $0x34] sm:$0xf]
      %v464 = vld [vmem:[%s3 + $0x38] sm:$0xf]
      %v465 = vld [vmem:[%s3 + $0x3c] sm:$0xf]
      %v466 = vld [vmem:[%s4] sm:$0x1]
      %v468 = vperm.slane %v466, 0
      %v486 = vunpack.c.l.b16 %v450
      %v487 = vunpack.c.l.b16 %v451
      %v488 = vunpack.c.l.b16 %v452
      %v489 = vunpack.c.l.b16 %v453
      %v490 = vunpack.c.l.b16 %v454
      %v491 = vunpack.c.l.b16 %v455
      %v492 = vunpack.c.l.b16 %v456
      %v493 = vunpack.c.l.b16 %v457
      %v494 = vunpack.c.l.b16 %v458
      %v495 = vunpack.c.l.b16 %v459
      %v496 = vunpack.c.l.b16 %v460
      %v497 = vunpack.c.l.b16 %v461
      %v498 = vunpack.c.l.b16 %v462
      %v499 = vunpack.c.l.b16 %v463
      %v500 = vunpack.c.l.b16 %v464
      %v501 = vunpack.c.l.b16 %v465
      %v502 = vpack.c.b16 %v487, %v486
      %v503 = vpack.c.b16 %v489, %v488
      %v504 = vpack.c.b16 %v491, %v490
      %v505 = vpack.c.b16 %v493, %v492
      %v506 = vpack.c.b16 %v495, %v494
      %v507 = vpack.c.b16 %v497, %v496
      %v508 = vpack.c.b16 %v499, %v498
      %v509 = vpack.c.b16 %v501, %v500
      %518 = vmatpush.bf16.msra.mxu0 %v509
      %519 = vmatpush.bf16.msra.mxu0 %v508
      %520 = vmatpush.bf16.msra.mxu0 %v507
      %521 = vmatpush.bf16.msra.mxu0 %v506
      %522 = vmatpush.bf16.msra.mxu0 %v505
      %523 = vmatpush.bf16.msra.mxu0 %v504
      %524 = vmatpush.bf16.msra.mxu0 %v503
      %525 = vmatpush.bf16.msra.mxu0 %v502
      %526 = vmatmul.bf16.gmra.mxu0 %v440
      %v527 = vpop.f32.mrf.mxu0
      %v528 = vadd.f32 %v468, %v527
      %v529 = vpop.f32.mrf.mxu0
      %v530 = vadd.f32 %v468, %v529
      %531 = vmatmul.bf16.gmra.mxu0 %v441
      %v532 = vpop.f32.mrf.mxu0
      %v533 = vadd.f32 %v468, %v532
      %v534 = vpop.f32.mrf.mxu0
      %v535 = vadd.f32 %v468, %v534
      %536 = vmatmul.bf16.gmra.mxu0 %v442
      %v537 = vpop.f32.mrf.mxu0
      %v538 = vadd.f32 %v468, %v537
      %v539 = vpop.f32.mrf.mxu0
      %v540 = vadd.f32 %v468, %v539
      %541 = vmatmul.bf16.gmra.mxu0 %v443
      %v542 = vpop.f32.mrf.mxu0
      %v543 = vadd.f32 %v468, %v542
      %v544 = vpop.f32.mrf.mxu0
      %v545 = vadd.f32 %v468, %v544
      %546 = vmatmul.bf16.gmra.mxu0 %v444
      %v547 = vpop.f32.mrf.mxu0
      %v548 = vadd.f32 %v468, %v547
      %v549 = vpop.f32.mrf.mxu0
      %v550 = vadd.f32 %v468, %v549
      %551 = vmatmul.bf16.gmra.mxu0 %v445
      %v552 = vpop.f32.mrf.mxu0
      %v553 = vadd.f32 %v468, %v552
      %v554 = vpop.f32.mrf.mxu0
      %v555 = vadd.f32 %v468, %v554
      %556 = vmatmul.bf16.gmra.mxu0 %v446
      %v557 = vpop.f32.mrf.mxu0
      %v558 = vadd.f32 %v468, %v557
      %v559 = vpop.f32.mrf.mxu0
      %v560 = vadd.f32 %v468, %v559
      %561 = vmatmul.bf16.gmra.mxu0 %v447
      %v562 = vpop.f32.mrf.mxu0
      %v563 = vadd.f32 %v468, %v562
      %v564 = vpop.f32.mrf.mxu0
      %v565 = vadd.f32 %v468, %v564
      %566 = vmatmul.bf16.gmra.mxu0 %v448
      %v567 = vpop.f32.mrf.mxu0
      %v568 = vadd.f32 %v468, %v567
      %v569 = vpop.f32.mrf.mxu0
      %v570 = vadd.f32 %v468, %v569
      %571 = vmatmul.bf16.gmra.mxu0 %v449
      %v572 = vpop.f32.mrf.mxu0
      %v573 = vadd.f32 %v468, %v572
      %v574 = vpop.f32.mrf.mxu0
      %575 = vdwg.mxu0
      %v576 = vmax.f32 %v528, 0.0
      %v577 = vmax.f32 %v530, 0.0
      %v578 = vmax.f32 %v533, 0.0
      %v579 = vmax.f32 %v535, 0.0
      %v580 = vmax.f32 %v538, 0.0
      %v581 = vmax.f32 %v540, 0.0
      %v582 = vmax.f32 %v543, 0.0
      %v583 = vmax.f32 %v545, 0.0
      %v584 = vmax.f32 %v548, 0.0
      %v585 = vmax.f32 %v550, 0.0
      %v586 = vmax.f32 %v553, 0.0
      %v587 = vmax.f32 %v555, 0.0
      %v588 = vmax.f32 %v558, 0.0
      %v589 = vmax.f32 %v560, 0.0
      %v590 = vmax.f32 %v563, 0.0
      %v591 = vmax.f32 %v565, 0.0
      %v592 = vmax.f32 %v568, 0.0
      %v593 = vmax.f32 %v570, 0.0
      %v594 = vmax.f32 %v573, 0.0
      %v595 = vpack.c.bf16 %v577, %v576
      %v596 = vpack.c.bf16 %v579, %v578
      %v597 = vpack.c.bf16 %v581, %v580
      %v598 = vpack.c.bf16 %v583, %v582
      %v599 = vpack.c.bf16 %v585, %v584
      %v600 = vpack.c.bf16 %v587, %v586
      %v601 = vpack.c.bf16 %v589, %v588
      %v602 = vpack.c.bf16 %v591, %v590
      %v603 = vpack.c.bf16 %v593, %v592
      %v604 = vpack.c.bf16 %v594, %v594
      %v605 = vld [vmem:[%s5] sm:$0xf]
      %v606 = vld [vmem:[%s5 + $0x4] sm:$0xf]
      %v607 = vld [vmem:[%s5 + $0x8] sm:$0xf]
      %v608 = vld [vmem:[%s5 + $0xc] sm:$0xf]
      %v609 = vld [vmem:[%s5 + $0x10] sm:$0xf]
      %v610 = vld [vmem:[%s5 + $0x14] sm:$0xf]
      %v611 = vld [vmem:[%s5 + $0x18] sm:$0xf]
      %v612 = vld [vmem:[%s5 + $0x1c] sm:$0xf]
      %v613 = vld [vmem:[%s5 + $0x20] sm:$0xf]
      %v614 = vld [vmem:[%s5 + $0x24] sm:$0xf]
      %v615 = vld [vmem:[%s5 + $0x28] sm:$0xf]
      %v616 = vld [vmem:[%s5 + $0x2c] sm:$0xf]
      %v617 = vld [vmem:[%s5 + $0x30] sm:$0xf]
      %v618 = vld [vmem:[%s5 + $0x34] sm:$0xf]
      %v619 = vld [vmem:[%s5 + $0x38] sm:$0xf]
      %v620 = vld [vmem:[%s5 + $0x3c] sm:$0xf]
      %v621 = vld [vmem:[%s6] sm:$0x1]
      %v623 = vperm.slane %v621, 0
      %v641 = vunpack.c.l.b16 %v605
      %v642 = vunpack.c.l.b16 %v606
      %v643 = vunpack.c.l.b16 %v607
      %v644 = vunpack.c.l.b16 %v608
      %v645 = vunpack.c.l.b16 %v609
      %v646 = vunpack.c.l.b16 %v610
      %v647 = vunpack.c.l.b16 %v611
      %v648 = vunpack.c.l.b16 %v612
      %v649 = vunpack.c.l.b16 %v613
      %v650 = vunpack.c.l.b16 %v614
      %v651 = vunpack.c.l.b16 %v615
      %v652 = vunpack.c.l.b16 %v616
      %v653 = vunpack.c.l.b16 %v617
      %v654 = vunpack.c.l.b16 %v618
      %v655 = vunpack.c.l.b16 %v619
      %v656 = vunpack.c.l.b16 %v620
      %v657 = vpack.c.b16 %v642, %v641
      %v658 = vpack.c.b16 %v644, %v643
      %v659 = vpack.c.b16 %v646, %v645
      %v660 = vpack.c.b16 %v648, %v647
      %v661 = vpack.c.b16 %v650, %v649
      %v662 = vpack.c.b16 %v652, %v651
      %v663 = vpack.c.b16 %v654, %v653
      %v664 = vpack.c.b16 %v656, %v655
      %673 = vmatpush.bf16.msra.mxu0 %v664
      %674 = vmatpush.bf16.msra.mxu0 %v663
      %675 = vmatpush.bf16.msra.mxu0 %v662
      %676 = vmatpush.bf16.msra.mxu0 %v661
      %677 = vmatpush.bf16.msra.mxu0 %v660
      %678 = vmatpush.bf16.msra.mxu0 %v659
      %679 = vmatpush.bf16.msra.mxu0 %v658
      %680 = vmatpush.bf16.msra.mxu0 %v657
      %681 = vmatmul.bf16.gmra.mxu0 %v595
      %v682 = vpop.f32.mrf.mxu0
      %v683 = vadd.f32 %v623, %v682
      %v684 = vpop.f32.mrf.mxu0
      %v685 = vadd.f32 %v623, %v684
      %686 = vmatmul.bf16.gmra.mxu0 %v596
      %v687 = vpop.f32.mrf.mxu0
      %v688 = vadd.f32 %v623, %v687
      %v689 = vpop.f32.mrf.mxu0
      %v690 = vadd.f32 %v623, %v689
      %691 = vmatmul.bf16.gmra.mxu0 %v597
      %v692 = vpop.f32.mrf.mxu0
      %v693 = vadd.f32 %v623, %v692
      %v694 = vpop.f32.mrf.mxu0
      %v695 = vadd.f32 %v623, %v694
      %696 = vmatmul.bf16.gmra.mxu0 %v598
      %v697 = vpop.f32.mrf.mxu0
      %v698 = vadd.f32 %v623, %v697
      %v699 = vpop.f32.mrf.mxu0
      %v700 = vadd.f32 %v623, %v699
      %701 = vmatmul.bf16.gmra.mxu0 %v599
      %v702 = vpop.f32.mrf.mxu0
      %v703 = vadd.f32 %v623, %v702
      %v704 = vpop.f32.mrf.mxu0
      %v705 = vadd.f32 %v623, %v704
      %706 = vmatmul.bf16.gmra.mxu0 %v600
      %v707 = vpop.f32.mrf.mxu0
      %v708 = vadd.f32 %v623, %v707
      %v709 = vpop.f32.mrf.mxu0
      %v710 = vadd.f32 %v623, %v709
      %711 = vmatmul.bf16.gmra.mxu0 %v601
      %v712 = vpop.f32.mrf.mxu0
      %v713 = vadd.f32 %v623, %v712
      %v714 = vpop.f32.mrf.mxu0
      %v715 = vadd.f32 %v623, %v714
      %716 = vmatmul.bf16.gmra.mxu0 %v602
      %v717 = vpop.f32.mrf.mxu0
      %v718 = vadd.f32 %v623, %v717
      %v719 = vpop.f32.mrf.mxu0
      %v720 = vadd.f32 %v623, %v719
      %721 = vmatmul.bf16.gmra.mxu0 %v603
      %v722 = vpop.f32.mrf.mxu0
      %v723 = vadd.f32 %v623, %v722
      %v724 = vpop.f32.mrf.mxu0
      %v725 = vadd.f32 %v623, %v724
      %726 = vmatmul.bf16.gmra.mxu0 %v604
      %v727 = vpop.f32.mrf.mxu0
      %v728 = vadd.f32 %v623, %v727
      %v729 = vpop.f32.mrf.mxu0
      %730 = vdwg.mxu0
      %vm731 = vcmask 130048
      %732 = vst.msk [vmem:[%s280] sm:$0xff] %vm731, %v683
      %733 = vst.msk [vmem:[%s280 + $0x8] sm:$0xff] %vm731, %v685
      %734 = vst.msk [vmem:[%s280 + $0x10] sm:$0xff] %vm731, %v688
      %735 = vst.msk [vmem:[%s280 + $0x18] sm:$0xff] %vm731, %v690
      %736 = vst.msk [vmem:[%s280 + $0x20] sm:$0xff] %vm731, %v693
      %737 = vst.msk [vmem:[%s280 + $0x28] sm:$0xff] %vm731, %v695
      %738 = vst.msk [vmem:[%s280 + $0x30] sm:$0xff] %vm731, %v698
      %739 = vst.msk [vmem:[%s280 + $0x38] sm:$0xff] %vm731, %v700
      %740 = vst.msk [vmem:[%s280 + $0x40] sm:$0xff] %vm731, %v703
      %741 = vst.msk [vmem:[%s280 + $0x48] sm:$0xff] %vm731, %v705
      %742 = vst.msk [vmem:[%s280 + $0x50] sm:$0xff] %vm731, %v708
      %743 = vst.msk [vmem:[%s280 + $0x58] sm:$0xff] %vm731, %v710
      %744 = vst.msk [vmem:[%s280 + $0x60] sm:$0xff] %vm731, %v713
      %745 = vst.msk [vmem:[%s280 + $0x68] sm:$0xff] %vm731, %v715
      %746 = vst.msk [vmem:[%s280 + $0x70] sm:$0xff] %vm731, %v718
      %747 = vst.msk [vmem:[%s280 + $0x78] sm:$0xff] %vm731, %v720
      %748 = vst.msk [vmem:[%s280 + $0x80] sm:$0xff] %vm731, %v723
      %749 = vst.msk [vmem:[%s280 + $0x88] sm:$0xff] %vm731, %v725
      %750 = vst.msk [vmem:[%s280 + $0x90] sm:$0xff] %vm731, %v728
      %s751 = smul.u32 19, %s18
      %p752 = scmp.lt.s32.totalorder %s751, 37
      %s753 = scalar_select %p752, %s751, 37
      %s754 = smul.addr %s753, 8
      %s755 = scalar_lea.vmem %s7, %s754
      // Predicated region
      $region49: #{tpu_custom_call.1} parent=47 // pred_check
        %p756 = pneg %p188
      $region50: #{tpu_custom_call.1} parent=47 // pred_check_branch
        %758 = sbr.rel (%p756) target = $region52
      $region51: #{tpu_custom_call.1} parent=47 // pred_region
        %s759 = smul.u32 19, %s18
      $region52: #{tpu_custom_call.1} parent=47 // pred_fallthru
        _
    $region48: #{tpu_custom_call.1} parent=5 // pred_fallthru
      _
    %p760 = scmp.le.s32.totalorder 2, %s13
    // Predicated region
    $region53: #{tpu_custom_call.1} parent=5 // pred_check
      %p761 = pneg %p760
    $region54: #{tpu_custom_call.1} parent=5 // pred_check_branch
      %763 = sbr.rel (%p761) target = $region56
    $region55: #{tpu_custom_call.1} parent=5 // pred_region
      %s764 = ssub.s32 %s13, 2
      // Predicated region
      $region57: #{tpu_custom_call.1} parent=55 // pred_check
        %p765 = pneg %p194
      $region58: #{tpu_custom_call.1} parent=55 // pred_check_branch
        %767 = sbr.rel (%p765) target = $region60
      $region59: #{tpu_custom_call.1} parent=55 // pred_region
        %s768 = smul.u32 19, %s19
        %p769 = scmp.lt.s32.totalorder %s768, 37
        %s770 = scalar_select %p769, %s768, 37
        %s771 = smul.addr %s770, 8
        %s772 = scalar_lea.vmem %s7, %s771
      $region60: #{tpu_custom_call.1} parent=55 // pred_fallthru
        _
    $region56: #{tpu_custom_call.1} parent=5 // pred_fallthru
      _
  $region6: #{tpu_custom_call.1} parent=0 // loop_footer
    %s17 = sadd.s32 1, %s13
  $region7: #{tpu_custom_call.1} parent=0 // loop_footer_branch
    %12 = sbr.rel target = $region3
  $region8: #{tpu_custom_call.1} parent=0 // loop_exit
    _

</llo_original>
